<compile_context>
chip_gen: v5e
topology: v5e:2x2
jax: 0.10.0
libtpu: 0.0.40
codegen_flags: <defaults>
</compile_context>

<pallas_src>
import functools

import jax
import jax.numpy as jnp
from jax.experimental import pallas as pl
from jax.experimental.pallas import tpu as pltpu

LANES = 128
NCORES = 2  # megacore split for v7x; harmless (serial) on v5e/v6e


def _bce_blur_kernel(pred_ref, true_ref, out_ref, *,
                     alpha, count, steps, nb_full, block_elems):
    c = pl.program_id(0)          # core (parallel) axis
    i = pl.program_id(1)          # reduction (arbitrary) axis
    b = c * steps + i             # logical row-block index

    # init this core's accumulator block on its first step
    @pl.when(i == 0)
    def _():
        out_ref[...] = jnp.zeros_like(out_ref)

    x = pred_ref[...].astype(jnp.float32)
    y = true_ref[...].astype(jnp.float32)

    # numerically-stable BCE-with-logits (matches torch.nn.BCEWithLogitsLoss)
    e = jnp.exp(-jnp.abs(x))                       # reused for bce AND sigmoid
    bce = jnp.maximum(x, 0.0) - x * y + jnp.log1p(e)

    # sigmoid(x) from the same exp(-|x|)
    r = 1.0 / (1.0 + e)
    p = jnp.where(x >= 0.0, r, e * r)

    dx = p - y
    alpha_factor = 1.0 - jnp.exp((dx - 1.0) / (alpha + 1e-4))
    loss = bce * alpha_factor

    # fully-valid block: plain elementwise accumulate (pure VPU, no mask work)
    @pl.when(b < nb_full)
    def _():
        out_ref[...] += loss

    # tail / out-of-range block: mask by global flat index (rare path)
    @pl.when(b >= nb_full)
    def _():
        rows_t, lanes = loss.shape
        row_ids = jax.lax.broadcasted_iota(jnp.int32, (rows_t, lanes), 0)
        col_ids = jax.lax.broadcasted_iota(jnp.int32, (rows_t, lanes), 1)
        idx = b * block_elems + row_ids * lanes + col_ids
        out_ref[...] += jnp.where(idx < count, loss, 0.0)


def bce_blur_with_logits_loss(pred, true, alpha=0.05, row_tile=1024):
    """Pallas TPU implementation of BCEBlurWithLogitsLoss.forward."""
    assert pred.shape == true.shape
    n = pred.size  # number of real elements (for the mean)

    # flatten in native dtype; pad ONLY if n is not already (8*128)-aligned
    flat_p = jnp.ravel(pred)
    flat_t = jnp.ravel(true)
    vreg = 8 * LANES
    padded = ((n + vreg - 1) // vreg) * vreg
    if padded != n:
        flat_p = jnp.pad(flat_p, (0, padded - n))
        flat_t = jnp.pad(flat_t, (0, padded - n))
    rows = padded // LANES                     # multiple of 8

    p2 = flat_p.reshape(rows, LANES)
    t2 = flat_t.reshape(rows, LANES)

    row_tile = min(row_tile, rows)             # still a multiple of 8
    block_elems = row_tile * LANES
    nb = pl.cdiv(rows, row_tile)               # total row blocks
    steps = pl.cdiv(nb, NCORES)                # per-core steps
    nb_full = n // block_elems                 # blocks with no padded tail

    # clamp the block index so out-of-range logical blocks (b >= nb) read a
    # valid block; their contribution is masked to zero inside the kernel.
    def in_map(c, i):
        return (jnp.minimum(c * steps + i, nb - 1), 0)

    in_spec = pl.BlockSpec((row_tile, LANES), in_map)
    out_spec = pl.BlockSpec((row_tile, LANES), lambda c, i: (c, 0))

    kernel = functools.partial(
        _bce_blur_kernel, alpha=float(alpha), count=n,
        steps=steps, nb_full=nb_full, block_elems=block_elems)

    cost = pl.CostEstimate(
        flops=15 * n,
        transcendentals=3 * n,
        bytes_accessed=(p2.size * p2.dtype.itemsize
                        + t2.size * t2.dtype.itemsize
                        + NCORES * row_tile * LANES * 4),
    )

    partials = pl.pallas_call(
        kernel,
        out_shape=jax.ShapeDtypeStruct((NCORES * row_tile, LANES), jnp.float32),
        grid_spec=pltpu.PrefetchScalarGridSpec(
            num_scalar_prefetch=0,
            grid=(NCORES, steps),
            in_specs=[in_spec, in_spec],
            out_specs=out_spec,
        ),
        compiler_params=pltpu.CompilerParams(
            dimension_semantics=("parallel", "arbitrary")),
        cost_estimate=cost,
    )(p2, t2)

    # tiny epilogue: sum per-core vector accumulators and take the mean
    return jnp.sum(partials) / jnp.float32(n)


def _reference(pred, true, alpha=0.05):
    x = pred.astype(jnp.float32)
    y = true.astype(jnp.float32)
    bce = jnp.maximum(x, 0.0) - x * y + jnp.log1p(jnp.exp(-jnp.abs(x)))
    p = jax.nn.sigmoid(x)
    dx = p - y
    af = 1.0 - jnp.exp((dx - 1.0) / (alpha + 1e-4))
    return jnp.mean(bce * af)


if __name__ == "__main__":
    key = jax.random.PRNGKey(0)
    k1, k2 = jax.random.split(key)

    # NCHW-shaped logits / targets, as the PyTorch module would see them.
    shape = (2, 4, 16, 16)
    pred = jax.random.normal(k1, shape, dtype=jnp.float32)
    true = (jax.random.uniform(k2, shape) > 0.5).astype(jnp.float32)

    out = bce_blur_with_logits_loss(pred, true, alpha=0.05)
    out = jax.block_until_ready(out)

    ref = _reference(pred, true, alpha=0.05)
    assert jnp.allclose(out, ref, atol=1e-5, rtol=1e-5), (out, ref)

    print("KERNEL_OK")
</pallas_src>

<mosaic_0001>
module attributes {stable_mosaic.version = 11 : i64} {
  func.func @_bce_blur_kernel(%arg0: i32, %arg1: i32, %arg2: memref<16x128xf32, #tpu.memory_space<vmem>>, %arg3: memref<16x128xf32, #tpu.memory_space<vmem>>, %arg4: memref<16x128xf32, #tpu.memory_space<vmem>>) attributes {dimension_semantics = [#tpu.dimension_semantics<parallel>, #tpu.dimension_semantics<arbitrary>], iteration_bounds = array<i64: 2, 1>, scalar_prefetch = 0 : i64, scratch_operands = 0 : i64, tpu.core_type = #tpu.core_type<tc>, window_params = [{transform_indices = @transform_0, window_bounds = array<i64: 16, 128>}, {transform_indices = @transform_1, window_bounds = array<i64: 16, 128>}, {transform_indices = @transform_2, window_bounds = array<i64: 16, 128>}]} {
    %c1_i32 = arith.constant 1 : i32
    %0 = arith.muli %arg0, %c1_i32 : i32
    %1 = arith.addi %0, %arg1 : i32
    %c0_i32 = arith.constant 0 : i32
    %2 = arith.cmpi eq, %arg1, %c0_i32 : i32
    %3 = arith.extui %2 : i1 to i32
    %c0_i32_0 = arith.constant 0 : i32
    %4 = arith.cmpi ne, %3, %c0_i32_0 : i32
    scf.if %4 {
      %cst_15 = arith.constant 0.000000e+00 : f32
      %40 = vector.broadcast %cst_15 : f32 to vector<16x128xf32>
      %c0_16 = arith.constant 0 : index
      %c0_17 = arith.constant 0 : index
      %41 = vector.load %arg4[%c0_16, %c0_17] : memref<16x128xf32, #tpu.memory_space<vmem>>, vector<16x128xf32>
      tpu.vector_store %arg4[%c0_16, %c0_17], %40 {strides = array<i32>} : memref<16x128xf32, #tpu.memory_space<vmem>>, vector<16x128xf32>,
    } else {
    }
    %c0 = arith.constant 0 : index
    %c0_1 = arith.constant 0 : index
    %5 = vector.load %arg2[%c0, %c0_1] : memref<16x128xf32, #tpu.memory_space<vmem>>, vector<16x128xf32>
    %c0_2 = arith.constant 0 : index
    %c0_3 = arith.constant 0 : index
    %6 = vector.load %arg3[%c0_2, %c0_3] : memref<16x128xf32, #tpu.memory_space<vmem>>, vector<16x128xf32>
    %7 = math.absf %5 : vector<16x128xf32>
    %cst = arith.constant 0.000000e+00 : f32
    %8 = vector.broadcast %cst : f32 to vector<16x128xf32>
    %9 = arith.subf %8, %7 : vector<16x128xf32>
    %10 = math.exp %9 : vector<16x128xf32>
    %cst_4 = arith.constant 0.000000e+00 : f32
    %11 = vector.broadcast %cst_4 : f32 to vector<16x128xf32>
    %12 = arith.maximumf %5, %11 : vector<16x128xf32>
    %13 = arith.mulf %5, %6 : vector<16x128xf32>
    %14 = arith.subf %12, %13 : vector<16x128xf32>
    %15 = math.log1p %10 : vector<16x128xf32>
    %16 = arith.addf %14, %15 : vector<16x128xf32>
    %cst_5 = arith.constant 1.000000e+00 : f32
    %17 = vector.broadcast %cst_5 : f32 to vector<16x128xf32>
    %18 = arith.addf %17, %10 : vector<16x128xf32>
    %cst_6 = arith.constant 1.000000e+00 : f32
    %19 = vector.broadcast %cst_6 : f32 to vector<16x128xf32>
    %20 = arith.divf %19, %18 : vector<16x128xf32>
    %cst_7 = arith.constant 0.000000e+00 : f32
    %21 = vector.broadcast %cst_7 : f32 to vector<16x128xf32>
    %22 = arith.cmpf oge, %5, %21 : vector<16x128xf32>
    %23 = arith.mulf %10, %20 : vector<16x128xf32>
    %24 = arith.select %22, %20, %23 : vector<16x128xi1>, vector<16x128xf32>
    %25 = arith.subf %24, %6 : vector<16x128xf32>
    %cst_8 = arith.constant 1.000000e+00 : f32
    %26 = vector.broadcast %cst_8 : f32 to vector<16x128xf32>
    %27 = arith.subf %25, %26 : vector<16x128xf32>
    %cst_9 = arith.constant 5.010000e-02 : f32
    %28 = vector.broadcast %cst_9 : f32 to vector<16x128xf32>
    %29 = arith.divf %27, %28 : vector<16x128xf32>
    %30 = math.exp %29 : vector<16x128xf32>
    %cst_10 = arith.constant 1.000000e+00 : f32
    %31 = vector.broadcast %cst_10 : f32 to vector<16x128xf32>
    %32 = arith.subf %31, %30 : vector<16x128xf32>
    %33 = arith.mulf %16, %32 : vector<16x128xf32>
    %c1_i32_11 = arith.constant 1 : i32
    %34 = arith.cmpi slt, %1, %c1_i32_11 : i32
    %35 = arith.extui %34 : i1 to i32
    %c0_i32_12 = arith.constant 0 : i32
    %36 = arith.cmpi ne, %35, %c0_i32_12 : i32
    scf.if %36 {
      %c0_15 = arith.constant 0 : index
      %c0_16 = arith.constant 0 : index
      %40 = vector.load %arg4[%c0_15, %c0_16] : memref<16x128xf32, #tpu.memory_space<vmem>>, vector<16x128xf32>
      %41 = arith.addf %40, %33 : vector<16x128xf32>
      %c0_17 = arith.constant 0 : index
      %c0_18 = arith.constant 0 : index
      %42 = vector.load %arg4[%c0_17, %c0_18] : memref<16x128xf32, #tpu.memory_space<vmem>>, vector<16x128xf32>
      tpu.vector_store %arg4[%c0_17, %c0_18], %41 {strides = array<i32>} : memref<16x128xf32, #tpu.memory_space<vmem>>, vector<16x128xf32>,
    } else {
    }
    %c1_i32_13 = arith.constant 1 : i32
    %37 = arith.cmpi sge, %1, %c1_i32_13 : i32
    %38 = arith.extui %37 : i1 to i32
    %c0_i32_14 = arith.constant 0 : i32
    %39 = arith.cmpi ne, %38, %c0_i32_14 : i32
    scf.if %39 {
      %40 = tpu.iota {dimensions = array<i32: 0>} : vector<16x128xi32>
      %41 = tpu.iota {dimensions = array<i32: 1>} : vector<16x128xi32>
      %c2048_i32 = arith.constant 2048 : i32
      %42 = arith.muli %1, %c2048_i32 : i32
      %c128_i32 = arith.constant 128 : i32
      %43 = vector.broadcast %c128_i32 : i32 to vector<16x128xi32>
      %44 = arith.muli %40, %43 : vector<16x128xi32>
      %45 = vector.broadcast %42 : i32 to vector<16x128xi32>
      %46 = arith.addi %45, %44 : vector<16x128xi32>
      %47 = arith.addi %46, %41 : vector<16x128xi32>
      %c0_15 = arith.constant 0 : index
      %c0_16 = arith.constant 0 : index
      %48 = vector.load %arg4[%c0_15, %c0_16] : memref<16x128xf32, #tpu.memory_space<vmem>>, vector<16x128xf32>
      %c2048_i32_17 = arith.constant 2048 : i32
      %49 = vector.broadcast %c2048_i32_17 : i32 to vector<16x128xi32>
      %50 = arith.cmpi slt, %47, %49 : vector<16x128xi32>
      %cst_18 = arith.constant 0.000000e+00 : f32
      %51 = vector.broadcast %cst_18 : f32 to vector<16x128xf32>
      %52 = arith.select %50, %33, %51 : vector<16x128xi1>, vector<16x128xf32>
      %53 = arith.addf %48, %52 : vector<16x128xf32>
      %c0_19 = arith.constant 0 : index
      %c0_20 = arith.constant 0 : index
      %54 = vector.load %arg4[%c0_19, %c0_20] : memref<16x128xf32, #tpu.memory_space<vmem>>, vector<16x128xf32>
      tpu.vector_store %arg4[%c0_19, %c0_20], %53 {strides = array<i32>} : memref<16x128xf32, #tpu.memory_space<vmem>>, vector<16x128xf32>,
    } else {
    }
    return
  }
  func.func @transform_0(%arg0: i32, %arg1: i32) -> (i32, i32) {
    %c1_i32 = arith.constant 1 : i32
    %0 = arith.muli %arg0, %c1_i32 : i32
    %1 = arith.addi %0, %arg1 : i32
    %c0_i32 = arith.constant 0 : i32
    %2 = arith.minsi %1, %c0_i32 : i32
    %c0_i32_0 = arith.constant 0 : i32
    %c0_i32_1 = arith.constant 0 : i32
    return %2, %c0_i32_0 : i32, i32
  }
  func.func @transform_1(%arg0: i32, %arg1: i32) -> (i32, i32) {
    %c1_i32 = arith.constant 1 : i32
    %0 = arith.muli %arg0, %c1_i32 : i32
    %1 = arith.addi %0, %arg1 : i32
    %c0_i32 = arith.constant 0 : i32
    %2 = arith.minsi %1, %c0_i32 : i32
    %c0_i32_0 = arith.constant 0 : i32
    %c0_i32_1 = arith.constant 0 : i32
    return %2, %c0_i32_0 : i32, i32
  }
  func.func @transform_2(%arg0: i32, %arg1: i32) -> (i32, i32) {
    %c0_i32 = arith.constant 0 : i32
    %c0_i32_0 = arith.constant 0 : i32
    return %arg0, %c0_i32 : i32, i32
  }
}

</mosaic_0001>

<llo_original>
// kernel: tpu_custom_call.1
$region0: #{tpu_custom_call.1}
  #allocation0 [shape = 'u32[]', space=smem, size = 0x4, offset = 0x4, fixed_abs, tag = 'smem constant byte address 0x4 - core index']
  #allocation1 [shape = 'u32[72,128]{1,0:T(1,128)}', space=vmem, size = 0x9000, scoped, tag = 'internal scratch']
  %s0 = inlined_call_operand.hbm [shape: f32[16,128], index: 0, kind: input, shape index: {}]
  %s1 = inlined_call_operand.hbm [shape: f32[16,128], index: 1, kind: input, shape index: {}]
  %s2 = inlined_call_operand.hbm [shape: f32[32,128], index: 2, kind: output, shape index: {}]
  %s3 = sld [smem:[#allocation0]]
  $region61: #{tpu_custom_call.1} parent=0
    _
  %s5 = ssub.s32 1, %s3
  %s6 = scalar_select 0, %s5, %s3
  $region1: #{tpu_custom_call.1} parent=0
    #allocation2 [shape = 'u8[16384]{0}', space=vmem, size = 0x4000, scoped, tag = 'input window, operand 0']
    #allocation3 [shape = 's32[2]{0}', space=sflag, size = 0x8, scoped, tag = 'scoped memory for tpu_custom_call.1']
    #allocation4 [shape = 's32[2]{0}', space=sflag, size = 0x8, scoped, tag = 'scoped memory for tpu_custom_call.1']
    #allocation5 [shape = 'u8[16384]{0}', space=vmem, size = 0x4000, scoped, tag = 'input window, operand 1']
    #allocation6 [shape = 's32[2]{0}', space=sflag, size = 0x8, scoped, tag = 'scoped memory for tpu_custom_call.1']
    #allocation7 [shape = 'u8[16384]{0}', space=vmem, size = 0x4000, scoped, tag = 'output window, operand 0']
    %7 = vsyncpa [#allocation3], 0
    %s8 = scalar_lea.sflag [#allocation3], 1
    %9 = vsyncpa %s8, 0
    %10 = vsyncpa [#allocation6], 0
    %s11 = scalar_lea.sflag [#allocation6], 1
    %12 = vsyncpa %s11, 0
    %13 = vsyncpa [#allocation4], 0
    %s14 = scalar_lea.sflag [#allocation4], 1
    %15 = vsyncpa %s14, 0
    loop: start=0, step=1, limit=4
    $region2: #{tpu_custom_call.1} parent=1 // loop_pre_header
      _
    $region3: #{tpu_custom_call.1} parent=1 // loop_header
      %s17 = sphi 0, %s21
      %p18 = scmp.ge.s32.totalorder %s17, 4
      %s24 = sphi 0, %s36
      %s25 = sphi 0, %s32
      %s26 = sphi 0, %s24
      %s27 = sphi 0, %s25
      %s28 = sphi 0, %s26
      %s29 = sphi 0, %s27
      %s45 = sphi 0, %s47
      %s48 = sphi 0, %s45
      %s49 = sphi 0, %s48
      %s65 = sphi 0, %s49
      %s77 = sphi 0, %s79
      %s80 = sphi 0, %s77
      %s81 = sphi 0, %s80
      %s97 = sphi 0, %s81
      %s103 = sphi 0, %s105
      %s106 = sphi 0, %s103
      %s107 = sphi 0, %s106
      %s123 = sphi 0, %s107
    $region4: #{tpu_custom_call.1} parent=1 // loop_header_branch
      %20 = sbr.rel (%p18) target = $region8
    $region5: #{tpu_custom_call.1} parent=1 // loop_body
      %s22 = ssub.s32 %s17, 1
      %s23 = ssub.s32 %s17, 2
      %s30 = sadd.s32 1, %s25
      %p31 = scmp.ge.s32.totalorder %s30, 1
      %s32 = scalar_select %p31, 0, %s30
      %s33 = sadd.s32 1, %s24
      %s34 = scalar_select %p31, %s33, %s24
      %p35 = scmp.ge.s32.totalorder %s34, 2
      %s36 = scalar_select %p35, 0, %s34
      %s37 = sadd.s32 %s24, %s25
      %p38 = scmp.lt.s32.totalorder %s37, 0
      %s39 = scalar_select %p38, %s37, 0
      %s40 = sadd.s32 %s36, %s32
      %p41 = scmp.lt.s32.totalorder %s40, 0
      %s42 = scalar_select %p41, %s40, 0
      %s43 = ssub.s32 %s39, %s42
      %p44 = scmp.eq.s32.totalorder %s43, 0
      %s46 = sadd.s32 %s45, 1
      %s47 = scalar_select %p44, %s45, %s46
      %p50 = pneg %p44
      %p51 = scmp.eq.s32.totalorder %s17, 1
      %p52 = por %p50, %p51
      %p53 = scmp.ne.s32.totalorder %s45, %s48
      %p54 = scmp.eq.s32.totalorder %s17, 0
      %p55 = por %p53, %p54
      %p56 = scmp.ne.s32.totalorder %s45, %s48
      %p57 = scmp.eq.s32.totalorder %s22, 1
      %p58 = por %p56, %p57
      %p59 = scmp.ne.s32.totalorder %s48, %s49
      %p60 = scmp.eq.s32.totalorder %s22, 0
      %p61 = por %p59, %p60
      %p62 = scmp.ne.s32.totalorder %s48, %s49
      %p63 = scmp.eq.s32.totalorder %s23, 1
      %p64 = por %p62, %p63
      %p66 = scmp.ne.s32.totalorder %s49, %s65
      %p67 = scmp.eq.s32.totalorder %s23, 0
      %p68 = por %p66, %p67
      %s69 = sadd.s32 %s24, %s25
      %p70 = scmp.lt.s32.totalorder %s69, 0
      %s71 = scalar_select %p70, %s69, 0
      %s72 = sadd.s32 %s36, %s32
      %p73 = scmp.lt.s32.totalorder %s72, 0
      %s74 = scalar_select %p73, %s72, 0
      %s75 = ssub.s32 %s71, %s74
      %p76 = scmp.eq.s32.totalorder %s75, 0
      %s78 = sadd.s32 %s77, 1
      %s79 = scalar_select %p76, %s77, %s78
      %p82 = pneg %p76
      %p83 = scmp.eq.s32.totalorder %s17, 1
      %p84 = por %p82, %p83
      %p85 = scmp.ne.s32.totalorder %s77, %s80
      %p86 = scmp.eq.s32.totalorder %s17, 0
      %p87 = por %p85, %p86
      %p88 = scmp.ne.s32.totalorder %s77, %s80
      %p89 = scmp.eq.s32.totalorder %s22, 1
      %p90 = por %p88, %p89
      %p91 = scmp.ne.s32.totalorder %s80, %s81
      %p92 = scmp.eq.s32.totalorder %s22, 0
      %p93 = por %p91, %p92
      %p94 = scmp.ne.s32.totalorder %s80, %s81
      %p95 = scmp.eq.s32.totalorder %s23, 1
      %p96 = por %p94, %p95
      %p98 = scmp.ne.s32.totalorder %s81, %s97
      %p99 = scmp.eq.s32.totalorder %s23, 0
      %p100 = por %p98, %p99
      %s101 = ssub.s32 %s24, %s36
      %p102 = scmp.eq.s32.totalorder %s101, 0
      %s104 = sadd.s32 %s103, 1
      %s105 = scalar_select %p102, %s103, %s104
      %p108 = pneg %p102
      %p109 = scmp.eq.s32.totalorder %s17, 1
      %p110 = por %p108, %p109
      %p111 = scmp.ne.s32.totalorder %s103, %s106
      %p112 = scmp.eq.s32.totalorder %s17, 0
      %p113 = por %p111, %p112
      %p114 = scmp.ne.s32.totalorder %s103, %s106
      %p115 = scmp.eq.s32.totalorder %s22, 1
      %p116 = por %p114, %p115
      %p117 = scmp.ne.s32.totalorder %s106, %s107
      %p118 = scmp.eq.s32.totalorder %s22, 0
      %p119 = por %p117, %p118
      %p120 = scmp.ne.s32.totalorder %s106, %s107
      %p121 = scmp.eq.s32.totalorder %s23, 1
      %p122 = por %p120, %p121
      %p124 = scmp.ne.s32.totalorder %s107, %s123
      %p125 = scmp.eq.s32.totalorder %s23, 0
      %p126 = por %p124, %p125
      %p127 = scmp.le.s32.totalorder 1, %s17
      %p128 = scmp.lt.s32.totalorder %s17, 3
      %p129 = pnand %p127, %p128
      %p130 = pneg %p129
      // Predicated region
      $region9: #{tpu_custom_call.1} parent=5 // pred_check
        _
      $region10: #{tpu_custom_call.1} parent=5 // pred_check_branch
        %132 = sbr.rel (%p129) target = $region12
      $region11: #{tpu_custom_call.1} parent=5 // pred_region
        %s133 = ssub.s32 %s17, 1
      $region12: #{tpu_custom_call.1} parent=5 // pred_fallthru
        _
      %p134 = scmp.lt.s32.totalorder %s17, 2
      // Predicated region
      $region13: #{tpu_custom_call.1} parent=5 // pred_check
        %p135 = pneg %p134
      $region14: #{tpu_custom_call.1} parent=5 // pred_check_branch
        %137 = sbr.rel (%p135) target = $region16
      $region15: #{tpu_custom_call.1} parent=5 // pred_region
        // Predicated region
        $region17: #{tpu_custom_call.1} parent=15 // pred_check
          %p138 = pneg %p55
        $region18: #{tpu_custom_call.1} parent=15 // pred_check_branch
          %140 = sbr.rel (%p138) target = $region20
        $region19: #{tpu_custom_call.1} parent=15 // pred_region
          %s141 = sand.u32 %s45, 1
          %s142 = scalar_lea.sflag [#allocation3], %s141
          %s143 = sand.u32 %s45, 1
          %s144 = smul.addr %s143, 16
          %s145 = scalar_lea.vmem [#allocation2], %s144
          %s146 = sadd.s32 %s24, %s25
          %p147 = scmp.lt.s32.totalorder %s146, 0
          %s148 = scalar_select %p147, %s146, 0
          %s149 = smul.u32 2, %s148
          %151 = vsyncadd %s142, 0
          %s152 = smul.addr %s149, 8
          %s153 = scalar_lea.hbm %s0, %s152
          %s154 = sshll.u32 %s153, 4
          %s155 = int_to_ptr.hbm [resolvable:$true] %s154
          %s156 = sshll.u32 %s145, 4
          %s157 = int_to_ptr.vmem [resolvable:$true] %s156
          %162 = dma.hbm_to_vmem [thread:$0]  %s155, 256, %s157, %s142, 128, 128, 8
        $region20: #{tpu_custom_call.1} parent=15 // pred_fallthru
          _
        // Predicated region
        $region21: #{tpu_custom_call.1} parent=15 // pred_check
          %p163 = pneg %p87
        $region22: #{tpu_custom_call.1} parent=15 // pred_check_branch
          %165 = sbr.rel (%p163) target = $region24
        $region23: #{tpu_custom_call.1} parent=15 // pred_region
          %s166 = sand.u32 %s77, 1
          %s167 = scalar_lea.sflag [#allocation6], %s166
          %s168 = sand.u32 %s77, 1
          %s169 = smul.addr %s168, 16
          %s170 = scalar_lea.vmem [#allocation5], %s169
          %s171 = sadd.s32 %s24, %s25
          %p172 = scmp.lt.s32.totalorder %s171, 0
          %s173 = scalar_select %p172, %s171, 0
          %s174 = smul.u32 2, %s173
          %176 = vsyncadd %s167, 0
          %s177 = smul.addr %s174, 8
          %s178 = scalar_lea.hbm %s1, %s177
          %s179 = sshll.u32 %s178, 4
          %s180 = int_to_ptr.hbm [resolvable:$true] %s179
          %s181 = sshll.u32 %s170, 4
          %s182 = int_to_ptr.vmem [resolvable:$true] %s181
          %187 = dma.hbm_to_vmem [thread:$0]  %s180, 256, %s182, %s167, 128, 128, 8
        $region24: #{tpu_custom_call.1} parent=15 // pred_fallthru
          _
      $region16: #{tpu_custom_call.1} parent=5 // pred_fallthru
        _
      %p188 = scmp.le.s32.totalorder 1, %s17
      %p189 = scmp.lt.s32.totalorder %s17, 3
      %p190 = pnand %p188, %p189
      %p191 = pneg %p190
      // Predicated region
      $region25: #{tpu_custom_call.1} parent=5 // pred_check
        _
      $region26: #{tpu_custom_call.1} parent=5 // pred_check_branch
        %193 = sbr.rel (%p190) target = $region28
      $region27: #{tpu_custom_call.1} parent=5 // pred_region
        %s194 = ssub.s32 %s17, 1
        %s195 = sand.u32 %s48, 1
        %s196 = scalar_lea.sflag [#allocation3], %s195
        %s197 = sand.u32 %s48, 1
        %s198 = smul.addr %s197, 16
        %s199 = scalar_lea.vmem [#allocation2], %s198
        // Predicated region
        $region29: #{tpu_custom_call.1} parent=27 // pred_check
          %p200 = pneg %p61
        $region30: #{tpu_custom_call.1} parent=27 // pred_check_branch
          %202 = sbr.rel (%p200) target = $region32
        $region31: #{tpu_custom_call.1} parent=27 // pred_region
          %204 = dma.done %s196, 256
        $region32: #{tpu_custom_call.1} parent=27 // pred_fallthru
          _
        %s205 = sand.u32 %s80, 1
        %s206 = scalar_lea.sflag [#allocation6], %s205
        %s207 = sand.u32 %s80, 1
        %s208 = smul.addr %s207, 16
        %s209 = scalar_lea.vmem [#allocation5], %s208
        // Predicated region
        $region33: #{tpu_custom_call.1} parent=27 // pred_check
          %p210 = pneg %p93
        $region34: #{tpu_custom_call.1} parent=27 // pred_check_branch
          %212 = sbr.rel (%p210) target = $region36
        $region35: #{tpu_custom_call.1} parent=27 // pred_region
          %214 = dma.done %s206, 256
        $region36: #{tpu_custom_call.1} parent=27 // pred_fallthru
          _
        %s215 = sand.u32 %s48, 1
        %s216 = scalar_lea.sflag [#allocation3], %s215
        %s217 = sand.u32 %s48, 1
        %s218 = smul.addr %s217, 16
        %s219 = scalar_lea.vmem [#allocation2], %s218
        %p220 = pneg %p61
        %p221 = pneg %p58
        %s222 = sand.u32 %s80, 1
        %s223 = scalar_lea.sflag [#allocation6], %s222
        %s224 = sand.u32 %s80, 1
        %s225 = smul.addr %s224, 16
        %s226 = scalar_lea.vmem [#allocation5], %s225
        %p227 = pneg %p93
        %p228 = pneg %p90
        %p229 = pneg %p119
        %p230 = pneg %p116
        %s231 = sand.u32 %s106, 1
        %s232 = scalar_lea.sflag [#allocation4], %s231
        %s233 = sand.u32 %s106, 1
        %s234 = smul.addr %s233, 16
        %s235 = scalar_lea.vmem [#allocation7], %s234
        %s236 = sadd.s32 %s26, %s27
        %p237 = scmp.lt.s32.totalorder %s236, 0
        %s238 = scalar_select %p237, %s236, 0
        %s239 = smul.u32 2, %s238
        %s240 = sadd.s32 %s26, %s27
        %p241 = scmp.lt.s32.totalorder %s240, 0
        %s242 = scalar_select %p241, %s240, 0
        %s243 = smul.u32 2, %s242
        %s244 = smul.u32 2, %s26
        %s245 = sadd.s32 %s26, %s27
        %p246 = scmp.eq.s32.totalorder %s27, 0
        // Predicated region
        $region37: #{tpu_custom_call.1} parent=27 // pred_check
          %p247 = pneg %p246
        $region38: #{tpu_custom_call.1} parent=27 // pred_check_branch
          %249 = sbr.rel (%p247) target = $region40
        $region39: #{tpu_custom_call.1} parent=27 // pred_region
          %250 = vst [vmem:[%s235] sm:$0xff] 0.0
          %251 = vst [vmem:[%s235 + $0x8] sm:$0xff] 0.0
        $region40: #{tpu_custom_call.1} parent=27 // pred_fallthru
          _
        %v252 = vld [vmem:[%s199] sm:$0xff]
        %v253 = vld [vmem:[%s199 + $0x8] sm:$0xff]
        %v254 = vld [vmem:[%s209] sm:$0xff]
        %v255 = vld [vmem:[%s209 + $0x8] sm:$0xff]
        %v256 = vand.u32 2147483647, %v252
        %v257 = vand.u32 2147483647, %v253
        %v258 = vsub.f32 0.0, %v256
        %v259 = vsub.f32 0.0, %v257
        %v260 = vmul.f32 %v258, 1.442695
        %v261 = vpow.pop %v260
        %v262 = vmul.f32 %v259, 1.442695
        %v263 = vpow.pop %v262
        %v264 = vmax.f32 %v252, 0.0
        %v265 = vmax.f32 %v253, 0.0
        %v266 = vmul.f32 %v252, %v254
        %v267 = vmul.f32 %v253, %v255
        %v268 = vsub.f32 %v264, %v266
        %v269 = vsub.f32 %v265, %v267
        %v270 = vadd.f32 %v261, 1.0
        %v271 = vlog2.pop %v270
        %v272 = vmul.f32 %v271, 0.6931472
        %v273 = vmul.f32 -0.5, %v261
        %v274 = vadd.f32 %v273, 1.0
        %v275 = vmul.f32 %v274, %v261
        %v276 = vand.u32 2147483647, %v261
        %vm277 = vcmp.lt.f32.partialorder %v276, 0.0004427343
        %v278 = vsel %vm277, %v275, %v272
        %v279 = vadd.f32 %v263, 1.0
        %v280 = vlog2.pop %v279
        %v281 = vmul.f32 %v280, 0.6931472
        %v282 = vmul.f32 -0.5, %v263
        %v283 = vadd.f32 %v282, 1.0
        %v284 = vmul.f32 %v283, %v263
        %v285 = vand.u32 2147483647, %v263
        %vm286 = vcmp.lt.f32.partialorder %v285, 0.0004427343
        %v287 = vsel %vm286, %v284, %v281
        %v288 = vadd.f32 %v268, %v278
        %v289 = vadd.f32 %v269, %v287
        %v290 = vadd.f32 %v261, 1.0
        %v291 = vadd.f32 %v263, 1.0
        %v292 = vrcp.pop %v290
        %v293 = vmul.f32 %v290, %v292
        %v294 = vsub.f32 1.0, %v293
        %v295 = vmul.f32 %v292, %v294
        %v296 = vadd.f32 %v292, %v295
        %vm297 = vweird.f32 %v290
        %vm298 = vweird.f32 %v292
        %vm299 = vmor %vm297, %vm298
        %v300 = vsel %vm299, %v292, %v296
        %v301 = vand.u32 2147483647, %v290
        %vm302 = vcmp.eq.f32.partialorder %v301, 8.507059e+37
        %v303 = vand.u32 %v290, 2147483648
        %v304 = vor.u32 1.1754944e-38, %v303
        %v305 = vsel %vm302, %v304, %v300
        %v306 = vmul.f32 1.0, %v305
        %v307 = vrcp.pop %v291
        %v308 = vmul.f32 %v291, %v307
        %v309 = vsub.f32 1.0, %v308
        %v310 = vmul.f32 %v307, %v309
        %v311 = vadd.f32 %v307, %v310
        %vm312 = vweird.f32 %v291
        %vm313 = vweird.f32 %v307
        %vm314 = vmor %vm312, %vm313
        %v315 = vsel %vm314, %v307, %v311
        %v316 = vand.u32 2147483647, %v291
        %vm317 = vcmp.eq.f32.partialorder %v316, 8.507059e+37
        %v318 = vand.u32 %v291, 2147483648
        %v319 = vor.u32 1.1754944e-38, %v318
        %v320 = vsel %vm317, %v319, %v315
        %v321 = vmul.f32 1.0, %v320
        %vm322 = vcmp.ge.f32.partialorder %v252, 0.0
        %vm323 = vcmp.ge.f32.partialorder %v253, 0.0
        %v324 = vmul.f32 %v261, %v306
        %v325 = vmul.f32 %v263, %v321
        %v326 = vsel %vm322, %v306, %v324
        %v327 = vsel %vm323, %v321, %v325
        %v328 = vsub.f32 %v326, %v254
        %v329 = vsub.f32 %v327, %v255
        %v330 = vsub.f32 %v328, 1.0
        %v331 = vsub.f32 %v329, 1.0
        %v332 = vrcp.pop 0.0501
        %v333 = vmul.f32 0.0501, %v332
        %v334 = vsub.f32 1.0, %v333
        %v335 = vmul.f32 %v332, %v334
        %v336 = vadd.f32 %v332, %v335
        %vm337 = vweird.f32 %v332
        %v338 = vsel %vm337, %v332, %v336
        %v339 = vmul.f32 %v330, %v338
        %v340 = vmul.f32 %v331, %v338
        %v341 = vmul.f32 %v339, 1.442695
        %v342 = vpow.pop %v341
        %v343 = vmul.f32 %v340, 1.442695
        %v344 = vpow.pop %v343
        %v345 = vsub.f32 1.0, %v342
        %v346 = vsub.f32 1.0, %v344
        %v347 = vmul.f32 %v288, %v345
        %v348 = vmul.f32 %v289, %v346
        %p349 = scmp.lt.s32.totalorder %s245, 1
        // Predicated region
        $region41: #{tpu_custom_call.1} parent=27 // pred_check
          %p350 = pneg %p349
        $region42: #{tpu_custom_call.1} parent=27 // pred_check_branch
          %352 = sbr.rel (%p350) target = $region44
        $region43: #{tpu_custom_call.1} parent=27 // pred_region
          %v353 = vld [vmem:[%s235] sm:$0xff]
          %v354 = vld [vmem:[%s235 + $0x8] sm:$0xff]
          %v355 = vadd.f32 %v353, %v347
          %v356 = vadd.f32 %v354, %v348
          %357 = vst [vmem:[%s235] sm:$0xff] %v355
          %358 = vst [vmem:[%s235 + $0x8] sm:$0xff] %v356
        $region44: #{tpu_custom_call.1} parent=27 // pred_fallthru
          _
        %p359 = scmp.ge.s32.totalorder %s245, 1
        // Predicated region
        $region45: #{tpu_custom_call.1} parent=27 // pred_check
          %p360 = pneg %p359
        $region46: #{tpu_custom_call.1} parent=27 // pred_check_branch
          %362 = sbr.rel (%p360) target = $region48
        $region47: #{tpu_custom_call.1} parent=27 // pred_region
          %v363 = vlaneseq
          %v364 = vshrl.u32 %v363, 7
          %v365 = vadd.s32 %v364, 8
          %v366 = vlaneseq
          %v367 = vand.u32 %v366, 127
          %s368 = smul.u32 %s245, 2048
          %v369 = vmul.u32 %v364, 128
          %v370 = vmul.u32 %v365, 128
          %v371 = vstv %s368
          %v372 = vadd.s32 %v371, %v369
          %v373 = vadd.s32 %v371, %v370
          %v374 = vadd.s32 %v372, %v367
          %v375 = vadd.s32 %v373, %v367
          %v376 = vld [vmem:[%s235] sm:$0xff]
          %v377 = vld [vmem:[%s235 + $0x8] sm:$0xff]
          %vm378 = vcmp.lt.s32.totalorder %v374, 2048
          %vm379 = vcmp.lt.s32.totalorder %v375, 2048
          %v380 = vsel %vm378, %v347, 0.0
          %v381 = vsel %vm379, %v348, 0.0
          %v382 = vadd.f32 %v376, %v380
          %v383 = vadd.f32 %v377, %v381
          %384 = vst [vmem:[%s235] sm:$0xff] %v382
          %385 = vst [vmem:[%s235 + $0x8] sm:$0xff] %v383
        $region48: #{tpu_custom_call.1} parent=27 // pred_fallthru
          _
        %s386 = sand.u32 %s106, 1
        %s387 = scalar_lea.sflag [#allocation4], %s386
        %s388 = sand.u32 %s106, 1
        %s389 = smul.addr %s388, 16
        %s390 = scalar_lea.vmem [#allocation7], %s389
        // Predicated region
        $region49: #{tpu_custom_call.1} parent=27 // pred_check
          %p391 = pneg %p116
        $region50: #{tpu_custom_call.1} parent=27 // pred_check_branch
          %393 = sbr.rel (%p391) target = $region52
        $region51: #{tpu_custom_call.1} parent=27 // pred_region
          %s394 = smul.u32 2, %s26
          %396 = vsyncadd %s387, 0
          %s397 = smul.addr %s394, 8
          %s398 = scalar_lea.hbm %s2, %s397
          %s399 = sshll.u32 %s390, 4
          %s400 = int_to_ptr.vmem [resolvable:$true] %s399
          %s401 = sshll.u32 %s398, 4
          %s402 = int_to_ptr.hbm [resolvable:$true] %s401
          %407 = dma.vmem_to_hbm [thread:$0]  %s400, 256, %s402, %s387, 128, 128, 8
        $region52: #{tpu_custom_call.1} parent=27 // pred_fallthru
          _
      $region28: #{tpu_custom_call.1} parent=5 // pred_fallthru
        _
      %p408 = scmp.le.s32.totalorder 2, %s17
      // Predicated region
      $region53: #{tpu_custom_call.1} parent=5 // pred_check
        %p409 = pneg %p408
      $region54: #{tpu_custom_call.1} parent=5 // pred_check_branch
        %411 = sbr.rel (%p409) target = $region56
      $region55: #{tpu_custom_call.1} parent=5 // pred_region
        %s412 = ssub.s32 %s17, 2
        // Predicated region
        $region57: #{tpu_custom_call.1} parent=55 // pred_check
          %p413 = pneg %p122
        $region58: #{tpu_custom_call.1} parent=55 // pred_check_branch
          %415 = sbr.rel (%p413) target = $region60
        $region59: #{tpu_custom_call.1} parent=55 // pred_region
          %s416 = sand.u32 %s107, 1
          %s417 = scalar_lea.sflag [#allocation4], %s416
          %s418 = sand.u32 %s107, 1
          %s419 = smul.addr %s418, 16
          %s420 = scalar_lea.vmem [#allocation7], %s419
          %422 = dma.done %s417, 256
        $region60: #{tpu_custom_call.1} parent=55 // pred_fallthru
          _
      $region56: #{tpu_custom_call.1} parent=5 // pred_fallthru
        _
    $region6: #{tpu_custom_call.1} parent=1 // loop_footer
      %s21 = sadd.s32 1, %s17
    $region7: #{tpu_custom_call.1} parent=1 // loop_footer_branch
      %16 = sbr.rel target = $region3
    $region8: #{tpu_custom_call.1} parent=1 // loop_exit
      _
    %423 = vsyncpa [#allocation3], 1
    %s424 = scalar_lea.sflag [#allocation3], 1
    %425 = vsyncpa %s424, 1
    %426 = vsyncpa [#allocation6], 1
    %s427 = scalar_lea.sflag [#allocation6], 1
    %428 = vsyncpa %s427, 1
    %429 = vsyncpa [#allocation4], 1
    %s430 = scalar_lea.sflag [#allocation4], 1
    %431 = vsyncpa %s430, 1

</llo_original>
